<compile_context>
chip_gen: v6e
topology: v6e:2x2x1
jax: 0.10.0
libtpu: 0.0.40
codegen_flags: <defaults>
</compile_context>

<pallas_src>
import jax
import jax.numpy as jnp
from jax.experimental import pallas as pl
from jax.experimental.pallas import tpu as pltpu


def _head_regressor_kernel(x_ref, mask_ref, ww_ref, wb_ref, vwt_ref, rwt_ref,
                           bias_ref, out_ref):
    # x_ref:    (TB, S, H)  bf16  last_hidden_state tile
    # mask_ref: (TB, S)     f32   attention mask tile (1.0 keep / 0.0 masked)
    # ww_ref:   (H, Hh)     bf16  W weight (already transposed for x @ W)
    # wb_ref:   (1, Hh)     f32   W bias
    # vwt_ref:  (1, Hh)     f32   V weight as a row vector
    # rwt_ref:  (1, H)      f32   regressor weight as a row vector
    # bias_ref: (2,) in SMEM f32  [V bias, regressor bias]
    # out_ref:  (1, 1, TB)  f32   logits tile (lane-dense)
    tb, s, hd = x_ref.shape
    hh = ww_ref.shape[1]

    x = x_ref[...]                                                  # (TB, S, H) bf16

    # h = tanh(x @ W_w + W_b): one tall bf16 MXU matmul with f32 accumulation.
    h = jnp.tanh(
        jnp.dot(x.reshape(tb * s, hd), ww_ref[...],
                preferred_element_type=jnp.float32) + wb_ref[...])  # (TB*S, Hh) f32

    v_b = bias_ref[0]
    r_b = bias_ref[1]

    # attention_scores = h @ V_w + V_b, done as VPU multiply + lane reduce so
    # the result stays lane-dense (TB, S).
    scores = jnp.sum(h.reshape(tb, s, hh) * vwt_ref[...].reshape(1, 1, hh),
                     axis=-1) + v_b                                 # (TB, S) f32
    # TODO(synk): at production RoBERTa shapes on v7x (64 MiB VMEM) this block
    # (and xr below) should be chunked over TB*S or computed as an N=1 MXU dot
    # to avoid the (TB, S, Hh)/(TB, S, H) f32 temporaries.

    # attention_scores[attention_mask == 0] = -10, then softmax over seq axis.
    scores = jnp.where(mask_ref[...] == 0.0, jnp.float32(-10.0), scores)
    scores = scores - jnp.max(scores, axis=-1, keepdims=True)
    e = jnp.exp(scores)
    p = e * pl.reciprocal(jnp.sum(e, axis=-1, keepdims=True), approx=True)

    # Regressor folded into the attentive reduction (dropout is eval identity):
    # xr[b, s] = x[b, s, :] . R  (independent of h -> overlaps the MXU matmul).
    xr = jnp.sum(x * rwt_ref[...].reshape(1, 1, hd), axis=-1)       # (TB, S) f32

    out_ref[...] = (jnp.sum(p * xr, axis=-1) + r_b).reshape(1, 1, tb)


def _round_up(x, m):
    return ((x + m - 1) // m) * m


def roberta_mask_filled_attention_head_regressor(last_hidden_state,
                                                 attention_mask,
                                                 params,
                                                 *,
                                                 batch_tile=16,
                                                 vmem_limit_bytes=None):
    """last_hidden_state: (B, S, H); attention_mask: (B, S) {0,1} -> (B, 1) f32."""
    B, S, H = last_hidden_state.shape
    Hh = params["W_w"].shape[1]

    # bf16 in HBM halves the dominant (B, S, H) tile DMA; all accumulation and
    # elementwise math remains f32 inside the kernel.
    x = last_hidden_state.astype(jnp.bfloat16)
    mask = attention_mask.reshape(B, S).astype(jnp.float32)

    # Batch tile: sublane-aligned (multiple of 8); when the whole batch would
    # fit one step, still try to split it into >=2 grid steps so both v7x
    # TensorCores get work from the "parallel" grid axis.
    if B <= batch_tile:
        tb = max(8, _round_up(pl.cdiv(B, 2), 8))
    else:
        tb = max(8, (batch_tile // 8) * 8)

    try:
        cap = int(pltpu.get_tpu_info().vmem_capacity_bytes)
    except Exception:
        cap = 64 << 20
    budget = (cap * 3) // 4

    def vmem_need(t):
        # double-buffered x/mask/out tiles
        io = 2 * (t * S * H * 2 + t * S * 4 + t * 4)
        # (double-buffered) weights: W (bf16), W_b, V_w, R_w
        w = 2 * (H * Hh * 2 + 2 * Hh * 4 + H * 4)
        # live intermediates: h, one (t,S,max(H,Hh)) f32 product temp, small (t,S) temps
        interm = t * S * Hh * 4 + t * S * max(H, Hh) * 4 + 6 * t * S * 4
        return io + w + interm

    # Shrink the batch tile (instead of silently clamping the VMEM limit) when
    # the estimate exceeds the budget — matters for v7x's 64 MiB VMEM.
    while vmem_need(tb) > budget and tb > 8:
        tb = max(8, ((tb // 2) // 8) * 8)

    Bp = _round_up(B, tb)
    if Bp != B:
        x = jnp.pad(x, ((0, Bp - B), (0, 0), (0, 0)))
        mask = jnp.pad(mask, ((0, Bp - B), (0, 0)))
    grid_n = Bp // tb

    ww = params["W_w"].astype(jnp.bfloat16)                       # (H, Hh) bf16
    wb = params["W_b"].reshape(1, Hh).astype(jnp.float32)         # (1, Hh)
    vwt = params["V_w"].reshape(1, Hh).astype(jnp.float32)        # (1, Hh)
    rwt = params["R_w"].reshape(1, H).astype(jnp.float32)         # (1, H)
    biases = jnp.stack([params["V_b"].reshape(()),
                        params["R_b"].reshape(())]).astype(jnp.float32)  # (2,)

    if vmem_limit_bytes is None:
        # No artificial 32 MiB floor for tiny shapes; generous 2x margin on the
        # estimate, capped at 3/4 of physical VMEM.
        need = vmem_need(tb)
        vmem_limit_bytes = int(min(budget, 2 * need + (8 << 20)))

    grid_spec = pltpu.PrefetchScalarGridSpec(
        num_scalar_prefetch=0,
        grid=(grid_n,),
        in_specs=[
            pl.BlockSpec((tb, S, H), lambda i: (i, 0, 0)),        # x tile (bf16)
            pl.BlockSpec((tb, S),    lambda i: (i, 0)),           # mask (lane-dense)
            pl.BlockSpec((H, Hh),    lambda i: (0, 0)),           # W weight (bf16)
            pl.BlockSpec((1, Hh),    lambda i: (0, 0)),           # W bias
            pl.BlockSpec((1, Hh),    lambda i: (0, 0)),           # V weight row
            pl.BlockSpec((1, H),     lambda i: (0, 0)),           # regressor weight row
            pl.BlockSpec(memory_space=pltpu.MemorySpace.SMEM),    # [V_b, R_b] scalars
        ],
        # Lane-dense output slab: (num_tiles, 1, tb) with a (1, 1, tb) block.
        out_specs=pl.BlockSpec((1, 1, tb), lambda i: (i, 0, 0)),
    )

    out = pl.pallas_call(
        _head_regressor_kernel,
        out_shape=jax.ShapeDtypeStruct((grid_n, 1, tb), jnp.float32),
        grid_spec=grid_spec,
        compiler_params=pltpu.CompilerParams(
            dimension_semantics=("parallel",),
            vmem_limit_bytes=vmem_limit_bytes),
    )(x, mask, ww, wb, vwt, rwt, biases)

    return out.reshape(Bp, 1)[:B]


def _reference(last_hidden_state, attention_mask, params):
    """Plain-JAX f32 reference mirroring the PyTorch forward (eval mode)."""
    x = last_hidden_state
    m = attention_mask[:, :, None].astype(jnp.float32)
    h = jnp.tanh(jnp.einsum("bsh,hk->bsk", x, params["W_w"]) + params["W_b"])
    scores = jnp.einsum("bsk,kj->bsj", h, params["V_w"]) + params["V_b"][0, 0]
    scores = jnp.where(m == 0.0, -10.0, scores)
    p = jax.nn.softmax(scores, axis=1)
    att = jnp.sum(p * x, axis=1)
    return att @ params["R_w"] + params["R_b"][0, 0]


if __name__ == "__main__":
    # Small shapes consistent with the module's forward:
    B, S, H, Hh = 2, 8, 32, 16   # batch, seq, roberta hidden_size, head_hidden_dim

    key = jax.random.PRNGKey(0)
    k_x, k_ww, k_wb, k_vw, k_vb, k_rw, k_rb = jax.random.split(key, 7)

    # "roberta last_hidden_state" stand-in (backbone itself is untranslatable here).
    last_hidden_state = jax.random.normal(k_x, (B, S, H), dtype=jnp.float32)
    # attention mask: leading positions valid, tail masked (deterministic).
    attention_mask = jnp.concatenate(
        [jnp.ones((B, S - 3), jnp.float32), jnp.zeros((B, 3), jnp.float32)], axis=1)

    params = {
        "W_w": jax.random.normal(k_ww, (H, Hh), dtype=jnp.float32) * 0.1,
        "W_b": jax.random.normal(k_wb, (1, Hh), dtype=jnp.float32) * 0.1,
        "V_w": jax.random.normal(k_vw, (Hh, 1), dtype=jnp.float32) * 0.1,
        "V_b": jax.random.normal(k_vb, (1, 1), dtype=jnp.float32) * 0.1,
        "R_w": jax.random.normal(k_rw, (H, 1), dtype=jnp.float32) * 0.1,
        "R_b": jax.random.normal(k_rb, (1, 1), dtype=jnp.float32) * 0.1,
    }

    # Tolerance accounts for the bf16 MXU operands and the EUP approx reciprocal
    # in the softmax denominator (both ~1e-3-level perturbations vs f32).
    ATOL, RTOL = 1e-2, 1e-2

    # Single-tile / small-batch path.
    out = roberta_mask_filled_attention_head_regressor(
        last_hidden_state, attention_mask, params)
    out = jax.block_until_ready(out)
    ref = _reference(last_hidden_state, attention_mask, params)
    assert out.shape == (B, 1)
    assert jnp.allclose(out, ref, atol=ATOL, rtol=RTOL), (out, ref)

    # Multi-tile path (grid > 1, batch padding) with batch_tile=8.
    B2 = 10
    x2 = jax.random.normal(jax.random.PRNGKey(1), (B2, S, H), dtype=jnp.float32)
    mask2 = jnp.concatenate(
        [jnp.ones((B2, S - 2), jnp.float32), jnp.zeros((B2, 2), jnp.float32)], axis=1)
    out2 = jax.block_until_ready(
        roberta_mask_filled_attention_head_regressor(
            x2, mask2, params, batch_tile=8))
    ref2 = _reference(x2, mask2, params)
    assert out2.shape == (B2, 1)
    assert jnp.allclose(out2, ref2, atol=ATOL, rtol=RTOL), (out2, ref2)

    print("KERNEL_OK")
</pallas_src>

<mosaic_0001>
module attributes {stable_mosaic.version = 11 : i64} {
  func.func @_head_regressor_kernel(%arg0: i32, %arg1: memref<8x8x32xbf16, #tpu.memory_space<vmem>>, %arg2: memref<8x8xf32, #tpu.memory_space<vmem>>, %arg3: memref<32x16xbf16, #tpu.memory_space<vmem>>, %arg4: memref<1x16xf32, #tpu.memory_space<vmem>>, %arg5: memref<1x16xf32, #tpu.memory_space<vmem>>, %arg6: memref<1x32xf32, #tpu.memory_space<vmem>>, %arg7: memref<2xf32, #tpu.memory_space<smem>>, %arg8: memref<1x1x8xf32, #tpu.memory_space<vmem>>) attributes {dimension_semantics = [#tpu.dimension_semantics<parallel>], iteration_bounds = array<i64: 1>, scalar_prefetch = 0 : i64, scratch_operands = 0 : i64, tpu.core_type = #tpu.core_type<tc>, window_params = [{transform_indices = @transform_0, window_bounds = array<i64: 8, 8, 32>}, {transform_indices = @transform_1, window_bounds = array<i64: 8, 8>}, {pipeline_mode = #tpu.pipeline_mode<synchronous>, transform_indices = @transform_2, window_bounds = array<i64: 32, 16>}, {pipeline_mode = #tpu.pipeline_mode<synchronous>, transform_indices = @transform_3, window_bounds = array<i64: 1, 16>}, {pipeline_mode = #tpu.pipeline_mode<synchronous>, transform_indices = @transform_4, window_bounds = array<i64: 1, 16>}, {pipeline_mode = #tpu.pipeline_mode<synchronous>, transform_indices = @transform_5, window_bounds = array<i64: 1, 32>}, {transform_indices = @transform_6, window_bounds = array<i64: 2>}, {transform_indices = @transform_7, window_bounds = array<i64: 1, 1, 8>}]} {
    %c0 = arith.constant 0 : index
    %c0_0 = arith.constant 0 : index
    %c0_1 = arith.constant 0 : index
    %0 = vector.load %arg1[%c0, %c0_0, %c0_1] : memref<8x8x32xbf16, #tpu.memory_space<vmem>>, vector<8x8x32xbf16>
    %1 = vector.shape_cast %0 : vector<8x8x32xbf16> to vector<64x32xbf16>
    %c0_2 = arith.constant 0 : index
    %c0_3 = arith.constant 0 : index
    %2 = vector.load %arg3[%c0_2, %c0_3] : memref<32x16xbf16, #tpu.memory_space<vmem>>, vector<32x16xbf16>
    %cst = arith.constant dense<0.000000e+00> : vector<64x16xf32>
    %3 = tpu.matmul %1, %2, %cst {dimension_numbers = #tpu.dot_dimension_numbers<[1], [0], [0], [1], [0, 0, 1, 1], [], []>} : vector<64x32xbf16>, vector<32x16xbf16>, vector<64x16xf32> -> vector<64x16xf32>
    %c0_4 = arith.constant 0 : index
    %c0_5 = arith.constant 0 : index
    %4 = vector.load %arg4[%c0_4, %c0_5] : memref<1x16xf32, #tpu.memory_space<vmem>>, vector<1x16xf32>
    %5 = vector.broadcast %4 : vector<1x16xf32> to vector<64x16xf32>
    %6 = arith.addf %3, %5 : vector<64x16xf32>
    %7 = math.tanh %6 : vector<64x16xf32>
    %c0_6 = arith.constant 0 : index
    %8 = memref.load %arg7[%c0_6] : memref<2xf32, #tpu.memory_space<smem>>
    %c1 = arith.constant 1 : index
    %9 = memref.load %arg7[%c1] : memref<2xf32, #tpu.memory_space<smem>>
    %10 = vector.shape_cast %7 : vector<64x16xf32> to vector<8x8x16xf32>
    %c0_7 = arith.constant 0 : index
    %c0_8 = arith.constant 0 : index
    %11 = vector.load %arg5[%c0_7, %c0_8] : memref<1x16xf32, #tpu.memory_space<vmem>>, vector<1x16xf32>
    %12 = vector.shape_cast %11 : vector<1x16xf32> to vector<1x1x16xf32>
    %13 = vector.broadcast %12 : vector<1x1x16xf32> to vector<8x8x16xf32>
    %14 = arith.mulf %10, %13 : vector<8x8x16xf32>
    %cst_9 = arith.constant dense<0.000000e+00> : vector<8x8xf32>
    %15 = vector.multi_reduction <add>, %14, %cst_9 [2] : vector<8x8x16xf32> to vector<8x8xf32>
    %16 = vector.broadcast %8 : f32 to vector<8x8xf32>
    %17 = arith.addf %15, %16 : vector<8x8xf32>
    %c0_10 = arith.constant 0 : index
    %c0_11 = arith.constant 0 : index
    %18 = vector.load %arg2[%c0_10, %c0_11] : memref<8x8xf32, #tpu.memory_space<vmem>>, vector<8x8xf32>
    %cst_12 = arith.constant 0.000000e+00 : f32
    %19 = vector.broadcast %cst_12 : f32 to vector<8x8xf32>
    %20 = arith.cmpf oeq, %18, %19 : vector<8x8xf32>
    %cst_13 = arith.constant -1.000000e+01 : f32
    %21 = vector.broadcast %cst_13 : f32 to vector<8x8xf32>
    %22 = arith.select %20, %21, %17 : vector<8x8xi1>, vector<8x8xf32>
    %cst_14 = arith.constant dense<0xFF800000> : vector<8xf32>
    %23 = vector.multi_reduction <maximumf>, %22, %cst_14 [1] : vector<8x8xf32> to vector<8xf32>
    %24 = vector.shape_cast %23 : vector<8xf32> to vector<8x1xf32>
    %25 = vector.broadcast %24 : vector<8x1xf32> to vector<8x8xf32>
    %26 = arith.subf %22, %25 : vector<8x8xf32>
    %27 = math.exp %26 : vector<8x8xf32>
    %cst_15 = arith.constant dense<0.000000e+00> : vector<8xf32>
    %28 = vector.multi_reduction <add>, %27, %cst_15 [1] : vector<8x8xf32> to vector<8xf32>
    %29 = vector.shape_cast %28 : vector<8xf32> to vector<8x1xf32>
    %30 = tpu.reciprocal %29 {approx = true} : vector<8x1xf32> -> vector<8x1xf32>
    %31 = vector.broadcast %30 : vector<8x1xf32> to vector<8x8xf32>
    %32 = arith.mulf %27, %31 : vector<8x8xf32>
    %c0_16 = arith.constant 0 : index
    %c0_17 = arith.constant 0 : index
    %33 = vector.load %arg6[%c0_16, %c0_17] : memref<1x32xf32, #tpu.memory_space<vmem>>, vector<1x32xf32>
    %34 = vector.shape_cast %33 : vector<1x32xf32> to vector<1x1x32xf32>
    %35 = arith.extf %0 : vector<8x8x32xbf16> to vector<8x8x32xf32>
    %36 = vector.broadcast %34 : vector<1x1x32xf32> to vector<8x8x32xf32>
    %37 = arith.mulf %35, %36 : vector<8x8x32xf32>
    %cst_18 = arith.constant dense<0.000000e+00> : vector<8x8xf32>
    %38 = vector.multi_reduction <add>, %37, %cst_18 [2] : vector<8x8x32xf32> to vector<8x8xf32>
    %39 = arith.mulf %32, %38 : vector<8x8xf32>
    %cst_19 = arith.constant dense<0.000000e+00> : vector<8xf32>
    %40 = vector.multi_reduction <add>, %39, %cst_19 [1] : vector<8x8xf32> to vector<8xf32>
    %41 = vector.broadcast %9 : f32 to vector<8xf32>
    %42 = arith.addf %40, %41 : vector<8xf32>
    %43 = vector.shape_cast %42 : vector<8xf32> to vector<1x1x8xf32>
    %c0_20 = arith.constant 0 : index
    %c0_21 = arith.constant 0 : index
    %c0_22 = arith.constant 0 : index
    %44 = vector.load %arg8[%c0_20, %c0_21, %c0_22] : memref<1x1x8xf32, #tpu.memory_space<vmem>>, vector<1x1x8xf32>
    tpu.vector_store %arg8[%c0_20, %c0_21, %c0_22], %43 {strides = array<i32>} : memref<1x1x8xf32, #tpu.memory_space<vmem>>, vector<1x1x8xf32>,
    return
  }
  func.func @transform_0(%arg0: i32) -> (i32, i32, i32) {
    %c0_i32 = arith.constant 0 : i32
    %c0_i32_0 = arith.constant 0 : i32
    %c0_i32_1 = arith.constant 0 : i32
    return %arg0, %c0_i32, %c0_i32_0 : i32, i32, i32
  }
  func.func @transform_1(%arg0: i32) -> (i32, i32) {
    %c0_i32 = arith.constant 0 : i32
    %c0_i32_0 = arith.constant 0 : i32
    return %arg0, %c0_i32 : i32, i32
  }
  func.func @transform_2(%arg0: i32) -> (i32, i32) {
    %c0_i32 = arith.constant 0 : i32
    %c0_i32_0 = arith.constant 0 : i32
    %c0_i32_1 = arith.constant 0 : i32
    return %c0_i32, %c0_i32_0 : i32, i32
  }
  func.func @transform_3(%arg0: i32) -> (i32, i32) {
    %c0_i32 = arith.constant 0 : i32
    %c0_i32_0 = arith.constant 0 : i32
    %c0_i32_1 = arith.constant 0 : i32
    return %c0_i32, %c0_i32_0 : i32, i32
  }
  func.func @transform_4(%arg0: i32) -> (i32, i32) {
    %c0_i32 = arith.constant 0 : i32
    %c0_i32_0 = arith.constant 0 : i32
    %c0_i32_1 = arith.constant 0 : i32
    return %c0_i32, %c0_i32_0 : i32, i32
  }
  func.func @transform_5(%arg0: i32) -> (i32, i32) {
    %c0_i32 = arith.constant 0 : i32
    %c0_i32_0 = arith.constant 0 : i32
    %c0_i32_1 = arith.constant 0 : i32
    return %c0_i32, %c0_i32_0 : i32, i32
  }
  func.func @transform_6(%arg0: i32) -> i32 {
    %c0_i32 = arith.constant 0 : i32
    %c0_i32_0 = arith.constant 0 : i32
    return %c0_i32 : i32
  }
  func.func @transform_7(%arg0: i32) -> (i32, i32, i32) {
    %c0_i32 = arith.constant 0 : i32
    %c0_i32_0 = arith.constant 0 : i32
    %c0_i32_1 = arith.constant 0 : i32
    return %arg0, %c0_i32, %c0_i32_0 : i32, i32, i32
  }
}

</mosaic_0001>

<llo_original>
// kernel: tpu_custom_call.1
$region0: #{tpu_custom_call.1}
  #allocation0 [shape = 'u32[]', space=smem, size = 0x4, offset = 0x4, fixed_abs, tag = 'smem constant byte address 0x4 - core index']
  #allocation1 [shape = 'u32[144,128]{1,0:T(1,128)}', space=vmem, size = 0x12000, scoped, tag = 'internal scratch']
  %s0 = inlined_call_operand.hbm [shape: bf16[8,8,32], index: 0, kind: input, shape index: {}]
  %s1 = inlined_call_operand.vmem [shape: f32[8,8], index: 1, kind: input, shape index: {}]
  %s2 = inlined_call_operand.vmem [shape: bf16[32,16], index: 2, kind: input, shape index: {}]
  %s3 = inlined_call_operand.vmem [shape: f32[1,16], index: 3, kind: input, shape index: {}]
  %s4 = inlined_call_operand.vmem [shape: f32[1,16], index: 4, kind: input, shape index: {}]
  %s5 = inlined_call_operand.vmem [shape: f32[1,32], index: 5, kind: input, shape index: {}]
  %s6 = inlined_call_operand.vmem [shape: f32[2], index: 6, kind: input, shape index: {}]
  %s7 = inlined_call_operand.hbm [shape: f32[1,1,8], index: 7, kind: output, shape index: {}]
  %s8 = sld [smem:[#allocation0]]
  $region46: #{tpu_custom_call.1} parent=0
    _
  %s10 = ssub.s32 1, %s8
  %s11 = scalar_select 0, %s10, %s8
  $region1: #{tpu_custom_call.1} parent=0
    #allocation2 [shape = 'u8[16384]{0}', space=vmem, size = 0x4000, scoped, tag = 'input window, operand 0, single buffered']
    #allocation3 [shape = 's32[1]{0}', space=sflag, size = 0x4, scoped, tag = 'scoped memory for tpu_custom_call.1']
    #allocation4 [shape = 's32[1]{0}', space=sflag, size = 0x4, scoped, tag = 'scoped memory for tpu_custom_call.1']
    #allocation5 [shape = 's32[1]{0}', space=sflag, size = 0x4, scoped, tag = 'scoped memory for tpu_custom_call.1']
    #allocation6 [shape = 'u8[512]{0}', space=smem, size = 0x200, scoped, tag = 'input window, operand 6, single buffered']
    #allocation7 [shape = 'u8[512]{0}', space=vmem, size = 0x400, scoped, tag = 'output window, operand 0, single buffered']
    %12 = vsyncpa [#allocation3], 0
    %13 = vsyncpa [#allocation5], 0
    %14 = vsyncpa [#allocation4], 0
    // Predicated region
    $region2: #{tpu_custom_call.1} parent=1 // pred_check
      _
    $region3: #{tpu_custom_call.1} parent=1 // pred_check_branch
      %16 = sbr.rel (0) target = $region5
    $region4: #{tpu_custom_call.1} parent=1 // pred_region
      %s18 = ssub.s32 512, 512
      %19 = vsyncadd [#allocation3], %s18
      %s20 = sshll.u32 [#allocation2], 4
      %s21 = int_to_ptr.vmem [resolvable:$true] %s20
      %26 = dma.hbm_to_vmem [thread:$0]  %s0, 512, %s21, [#allocation3], 64, 64, 4
    $region5: #{tpu_custom_call.1} parent=1 // pred_fallthru
      _
    // Predicated region
    $region6: #{tpu_custom_call.1} parent=1 // pred_check
      _
    $region7: #{tpu_custom_call.1} parent=1 // pred_check_branch
      %28 = sbr.rel (0) target = $region9
    $region8: #{tpu_custom_call.1} parent=1 // pred_region
      _
    $region9: #{tpu_custom_call.1} parent=1 // pred_fallthru
      _
    // Predicated region
    $region10: #{tpu_custom_call.1} parent=1 // pred_check
      _
    $region11: #{tpu_custom_call.1} parent=1 // pred_check_branch
      %30 = sbr.rel (0) target = $region13
    $region12: #{tpu_custom_call.1} parent=1 // pred_region
      _
    $region13: #{tpu_custom_call.1} parent=1 // pred_fallthru
      _
    // Predicated region
    $region14: #{tpu_custom_call.1} parent=1 // pred_check
      _
    $region15: #{tpu_custom_call.1} parent=1 // pred_check_branch
      %32 = sbr.rel (0) target = $region17
    $region16: #{tpu_custom_call.1} parent=1 // pred_region
      _
    $region17: #{tpu_custom_call.1} parent=1 // pred_fallthru
      _
    // Predicated region
    $region18: #{tpu_custom_call.1} parent=1 // pred_check
      _
    $region19: #{tpu_custom_call.1} parent=1 // pred_check_branch
      %34 = sbr.rel (0) target = $region21
    $region20: #{tpu_custom_call.1} parent=1 // pred_region
      _
    $region21: #{tpu_custom_call.1} parent=1 // pred_fallthru
      _
    // Predicated region
    $region22: #{tpu_custom_call.1} parent=1 // pred_check
      _
    $region23: #{tpu_custom_call.1} parent=1 // pred_check_branch
      %36 = sbr.rel (0) target = $region25
    $region24: #{tpu_custom_call.1} parent=1 // pred_region
      _
    $region25: #{tpu_custom_call.1} parent=1 // pred_fallthru
      _
    // Predicated region
    $region26: #{tpu_custom_call.1} parent=1 // pred_check
      _
    $region27: #{tpu_custom_call.1} parent=1 // pred_check_branch
      %38 = sbr.rel (0) target = $region29
    $region28: #{tpu_custom_call.1} parent=1 // pred_region
      %s40 = ssub.s32 16, 16
      %41 = vsyncadd [#allocation5], %s40
      %s43 = sshll.u32 %s6, 4
      %s44 = int_to_ptr.vmem [resolvable:$true] %s43
      %46 = dma.vmem_to_smem %s44, 16, [#allocation6], [#allocation5]
    $region29: #{tpu_custom_call.1} parent=1 // pred_fallthru
      _
    // Predicated region
    $region30: #{tpu_custom_call.1} parent=1 // pred_check
      _
    $region31: #{tpu_custom_call.1} parent=1 // pred_check_branch
      %48 = sbr.rel (0) target = $region33
    $region32: #{tpu_custom_call.1} parent=1 // pred_region
      %49 = dma.done [#allocation3], 512
    $region33: #{tpu_custom_call.1} parent=1 // pred_fallthru
      _
    // Predicated region
    $region34: #{tpu_custom_call.1} parent=1 // pred_check
      _
    $region35: #{tpu_custom_call.1} parent=1 // pred_check_branch
      %51 = sbr.rel (0) target = $region37
    $region36: #{tpu_custom_call.1} parent=1 // pred_region
      %52 = dma.done [#allocation5], 16
    $region37: #{tpu_custom_call.1} parent=1 // pred_fallthru
      _
    %53 = sfence
    %v55 = vld [vmem:[#allocation2] sm:$0xf]
    %v56 = vld [vmem:[#allocation2 + $0x4] sm:$0xf]
    %v57 = vld [vmem:[#allocation2 + $0x8] sm:$0xf]
    %v58 = vld [vmem:[#allocation2 + $0xc] sm:$0xf]
    %v59 = vld [vmem:[#allocation2 + $0x10] sm:$0xf]
    %v60 = vld [vmem:[#allocation2 + $0x14] sm:$0xf]
    %v61 = vld [vmem:[#allocation2 + $0x18] sm:$0xf]
    %v62 = vld [vmem:[#allocation2 + $0x1c] sm:$0xf]
    %v63 = vld [vmem:[%s2] sm:$0xf]
    %v64 = vld [vmem:[%s2 + $0x4] sm:$0xf]
    %v65 = vld [vmem:[%s2 + $0x8] sm:$0xf]
    %v66 = vld [vmem:[%s2 + $0xc] sm:$0xf]
    %v67 = vld [vmem:[%s3] sm:$0x1]
    %v69 = vlaneseq
    %v70 = vshrl.u32 %v69, 7
    %v71 = vsub.s32 0, %v70
    %v72 = vrot.slane %v67, %v71
    %v82 = vunpack.c.l.b16 %v55
    %v83 = vunpack.c.l.b16 %v56
    %v84 = vunpack.c.l.b16 %v57
    %v85 = vunpack.c.l.b16 %v58
    %v86 = vunpack.c.l.b16 %v59
    %v87 = vunpack.c.l.b16 %v60
    %v88 = vunpack.c.l.b16 %v61
    %v89 = vunpack.c.l.b16 %v62
    %v90 = vpack.c.b16 %v83, %v82
    %v91 = vpack.c.b16 %v85, %v84
    %v92 = vpack.c.b16 %v87, %v86
    %v93 = vpack.c.b16 %v89, %v88
    %v98 = vunpack.c.l.b16 %v63
    %v99 = vunpack.c.l.b16 %v64
    %v100 = vunpack.c.l.b16 %v65
    %v101 = vunpack.c.l.b16 %v66
    %v102 = vpack.c.b16 %v99, %v98
    %v103 = vpack.c.b16 %v101, %v100
    %vm106 = vcmask 261120
    %v108 = vsel %vm106, %v90, 0
    %v111 = vsel %vm106, %v91, 0
    %v114 = vsel %vm106, %v92, 0
    %v117 = vsel %vm106, %v93, 0
    %119 = vmatprep.subr.bf16.mxu0 0
    %120 = vmatpush1.bf16.msra.mxu0 0
    %121 = vmatprep.subr.bf16.mxu0 0
    %122 = vmatpush1.bf16.msra.mxu0 0
    %123 = vmatprep.subr.bf16.mxu0 0
    %124 = vmatpush1.bf16.msra.mxu0 0
    %125 = vmatprep.subr.bf16.mxu0 0
    %126 = vmatpush1.bf16.msra.mxu0 0
    %127 = vmatprep.subr.bf16.mxu0 0
    %128 = vmatpush1.bf16.msra.mxu0 0
    %129 = vmatprep.subr.bf16.mxu0 0
    %130 = vmatpush1.bf16.msra.mxu0 0
    %131 = vmatprep.subr.bf16.mxu0 0
    %132 = vmatpush1.bf16.msra.mxu0 %v103
    %133 = vmatprep.subr.bf16.mxu0 0
    %134 = vmatpush1.bf16.msra.mxu0 %v102
    %135 = vmatprep.subr.bf16.mxu0 0
    %136 = vmatpush2.bf16.msra.mxu0 0
    %137 = vmatprep.subr.bf16.mxu0 0
    %138 = vmatpush2.bf16.msra.mxu0 0
    %139 = vmatprep.subr.bf16.mxu0 0
    %140 = vmatpush2.bf16.msra.mxu0 0
    %141 = vmatprep.subr.bf16.mxu0 0
    %142 = vmatpush2.bf16.msra.mxu0 0
    %143 = vmatprep.subr.bf16.mxu0 0
    %144 = vmatpush2.bf16.msra.mxu0 0
    %145 = vmatprep.subr.bf16.mxu0 0
    %146 = vmatpush2.bf16.msra.mxu0 0
    %147 = vmatprep.subr.bf16.mxu0 0
    %148 = vmatpush2.bf16.msra.mxu0 0
    %149 = vmatprep.subr.bf16.mxu0 0
    %150 = vmatpush2.bf16.msra.mxu0 0
    %151 = vmatprep.mubr.bf16.mxu0 0
    %152 = vmatmul.mubr.bf16.gmra.mxu0 %v108
    %v153 = vpop.f32.mrf.mxu0
    %v154 = vadd.f32 %v72, %v153
    %v155 = vpop.f32.mrf.mxu0
    %v156 = vpop.f32.mrf.mxu0
    %v157 = vadd.f32 %v72, %v156
    %v158 = vpop.f32.mrf.mxu0
    %159 = vmatprep.mubr.bf16.mxu0 0
    %160 = vmatmul.mubr.bf16.gmra.mxu0 %v111
    %v161 = vpop.f32.mrf.mxu0
    %v162 = vadd.f32 %v72, %v161
    %v163 = vpop.f32.mrf.mxu0
    %v164 = vpop.f32.mrf.mxu0
    %v165 = vadd.f32 %v72, %v164
    %v166 = vpop.f32.mrf.mxu0
    %167 = vmatprep.mubr.bf16.mxu0 0
    %168 = vmatmul.mubr.bf16.gmra.mxu0 %v114
    %v169 = vpop.f32.mrf.mxu0
    %v170 = vadd.f32 %v72, %v169
    %v171 = vpop.f32.mrf.mxu0
    %v172 = vpop.f32.mrf.mxu0
    %v173 = vadd.f32 %v72, %v172
    %v174 = vpop.f32.mrf.mxu0
    %175 = vmatprep.mubr.bf16.mxu0 0
    %176 = vmatmul.mubr.bf16.gmra.mxu0 %v117
    %v177 = vpop.f32.mrf.mxu0
    %v178 = vadd.f32 %v72, %v177
    %v179 = vpop.f32.mrf.mxu0
    %v180 = vpop.f32.mrf.mxu0
    %v181 = vadd.f32 %v72, %v180
    %v182 = vpop.f32.mrf.mxu0
    %183 = vdwg.mxu0
    %v184 = vtanh.pop %v154
    %v185 = vtanh.pop %v157
    %v186 = vtanh.pop %v162
    %v187 = vtanh.pop %v165
    %v188 = vtanh.pop %v170
    %v189 = vtanh.pop %v173
    %v190 = vtanh.pop %v178
    %v191 = vtanh.pop %v181
    %s192 = sld [smem:[#allocation6]]
    %s193 = sld [smem:[#allocation6 + $0x1]]
    %v194 = vld [vmem:[%s4] sm:$0x1]
    %v196 = vlaneseq
    %v197 = vshrl.u32 %v196, 7
    %v198 = vsub.s32 0, %v197
    %v199 = vrot.slane %v194, %v198
    %v201 = vmul.f32 %v184, %v199
    %v202 = vmul.f32 %v185, %v199
    %v203 = vmul.f32 %v186, %v199
    %v204 = vmul.f32 %v187, %v199
    %v205 = vmul.f32 %v188, %v199
    %v206 = vmul.f32 %v189, %v199
    %v207 = vmul.f32 %v190, %v199
    %v208 = vmul.f32 %v191, %v199
    %vm209 = vcmask 130048
    %v210 = vsel %vm209, %v201, 0.0
    %211 = vadd.xlane.f32.xlu0 %v210
    %v212 = vpop.xlane.xlu0 %211
    %v213 = vsel %vm209, %v202, 0.0
    %214 = vadd.xlane.f32.xlu0 %v213
    %v215 = vpop.xlane.xlu0 %214
    %v216 = vsel %vm209, %v203, 0.0
    %217 = vadd.xlane.f32.xlu0 %v216
    %v218 = vpop.xlane.xlu0 %217
    %v219 = vsel %vm209, %v204, 0.0
    %220 = vadd.xlane.f32.xlu0 %v219
    %v221 = vpop.xlane.xlu0 %220
    %v222 = vsel %vm209, %v205, 0.0
    %223 = vadd.xlane.f32.xlu0 %v222
    %v224 = vpop.xlane.xlu0 %223
    %v225 = vsel %vm209, %v206, 0.0
    %226 = vadd.xlane.f32.xlu0 %v225
    %v227 = vpop.xlane.xlu0 %226
    %v228 = vsel %vm209, %v207, 0.0
    %229 = vadd.xlane.f32.xlu0 %v228
    %v230 = vpop.xlane.xlu0 %229
    %v231 = vsel %vm209, %v208, 0.0
    %232 = vadd.xlane.f32.xlu0 %v231
    %v233 = vpop.xlane.xlu0 %232
    %v234 = vstv %s192
    %v235 = vadd.f32 %v212, %v234
    %v236 = vadd.f32 %v215, %v234
    %v237 = vadd.f32 %v218, %v234
    %v238 = vadd.f32 %v221, %v234
    %v239 = vadd.f32 %v224, %v234
    %v240 = vadd.f32 %v227, %v234
    %v241 = vadd.f32 %v230, %v234
    %v242 = vadd.f32 %v233, %v234
    %v243 = vld [vmem:[%s1] sm:$0xff]
    %vm244 = vcmp.eq.f32.partialorder %v243, 0.0
    %v253 = vlaneseq
    %v254 = vand.u32 %v253, 127
    %v255 = vlaneseq
    %v256 = vshrl.u32 %v255, 7
    %v257 = vsub.s32 %v254, %v256
    %v258 = vrot.slane %v235, %v257
    %v259 = vlaneseq
    %v260 = vshrl.u32 %v259, 7
    %v261 = vsub.s32 %v254, %v260
    %v262 = vrot.slane %v236, %v261
    %v263 = vlaneseq
    %v264 = vshrl.u32 %v263, 7
    %v265 = vsub.s32 %v254, %v264
    %v266 = vrot.slane %v237, %v265
    %v267 = vlaneseq
    %v268 = vshrl.u32 %v267, 7
    %v269 = vsub.s32 %v254, %v268
    %v270 = vrot.slane %v238, %v269
    %v271 = vlaneseq
    %v272 = vshrl.u32 %v271, 7
    %v273 = vsub.s32 %v254, %v272
    %v274 = vrot.slane %v239, %v273
    %v275 = vlaneseq
    %v276 = vshrl.u32 %v275, 7
    %v277 = vsub.s32 %v254, %v276
    %v278 = vrot.slane %v240, %v277
    %v279 = vlaneseq
    %v280 = vshrl.u32 %v279, 7
    %v281 = vsub.s32 %v254, %v280
    %v282 = vrot.slane %v241, %v281
    %v283 = vlaneseq
    %v284 = vshrl.u32 %v283, 7
    %v285 = vsub.s32 %v254, %v284
    %v286 = vrot.slane %v242, %v285
    %vm287 = vcmask 1041409
    %v288 = vsel %vm287, %v262, %v258
    %vm289 = vcmask 1042434
    %v290 = vsel %vm289, %v266, %v288
    %vm291 = vcmask 1043459
    %v292 = vsel %vm291, %v270, %v290
    %vm293 = vcmask 1044484
    %v294 = vsel %vm293, %v274, %v292
    %vm295 = vcmask 1045509
    %v296 = vsel %vm295, %v278, %v294
    %vm297 = vcmask 1046534
    %v298 = vsel %vm297, %v282, %v296
    %vm299 = vcmask 1047559
    %v300 = vsel %vm299, %v286, %v298
    %v302 = vsel %vm244, -10.0, %v300
    %vm303 = vcmask 64512
    %v304 = vsel %vm303, %v302, -inf
    %305 = vmax.xlane.f32.xlu0 %v304
    %v306 = vpop.xlane.xlu0 %305
    %v307 = vsub.f32 %v302, %v306
    %v308 = vmul.f32 %v307, 1.442695
    %v309 = vpow.pop %v308
    %v310 = vsel %vm303, %v309, 0.0
    %311 = vadd.xlane.f32.xlu0 %v310
    %v312 = vpop.xlane.xlu0 %311
    %v313 = vrcp.pop %v312
    %v314 = vmul.f32 %v309, %v313
    %v315 = vld [vmem:[%s5] sm:$0x1]
    %v316 = vunpack.c.l.bf16 %v55
    %v317 = vunpack.c.l.bf16 %v56
    %v318 = vunpack.c.l.bf16 %v57
    %v319 = vunpack.c.l.bf16 %v58
    %v320 = vunpack.c.l.bf16 %v59
    %v321 = vunpack.c.l.bf16 %v60
    %v322 = vunpack.c.l.bf16 %v61
    %v323 = vunpack.c.l.bf16 %v62
    %v325 = vlaneseq
    %v326 = vshrl.u32 %v325, 7
    %v327 = vsub.s32 0, %v326
    %v328 = vrot.slane %v315, %v327
    %v330 = vmul.f32 %v316, %v328
    %v331 = vmul.f32 %v317, %v328
    %v332 = vmul.f32 %v318, %v328
    %v333 = vmul.f32 %v319, %v328
    %v334 = vmul.f32 %v320, %v328
    %v335 = vmul.f32 %v321, %v328
    %v336 = vmul.f32 %v322, %v328
    %v337 = vmul.f32 %v323, %v328
    %v338 = vsel %vm106, %v330, 0.0
    %339 = vadd.xlane.f32.xlu0 %v338
    %v340 = vpop.xlane.xlu0 %339
    %v341 = vsel %vm106, %v331, 0.0
    %342 = vadd.xlane.f32.xlu0 %v341
    %v343 = vpop.xlane.xlu0 %342
    %v344 = vsel %vm106, %v332, 0.0
    %345 = vadd.xlane.f32.xlu0 %v344
    %v346 = vpop.xlane.xlu0 %345
    %v347 = vsel %vm106, %v333, 0.0
    %348 = vadd.xlane.f32.xlu0 %v347
    %v349 = vpop.xlane.xlu0 %348
    %v350 = vsel %vm106, %v334, 0.0
    %351 = vadd.xlane.f32.xlu0 %v350
    %v352 = vpop.xlane.xlu0 %351
    %v353 = vsel %vm106, %v335, 0.0
    %354 = vadd.xlane.f32.xlu0 %v353
    %v355 = vpop.xlane.xlu0 %354
    %v356 = vsel %vm106, %v336, 0.0
    %357 = vadd.xlane.f32.xlu0 %v356
    %v358 = vpop.xlane.xlu0 %357
    %v359 = vsel %vm106, %v337, 0.0
    %360 = vadd.xlane.f32.xlu0 %v359
    %v361 = vpop.xlane.xlu0 %360
    %v370 = vlaneseq
    %v371 = vshrl.u32 %v370, 7
    %v372 = vsub.s32 %v254, %v371
    %v373 = vrot.slane %v340, %v372
    %v374 = vlaneseq
    %v375 = vshrl.u32 %v374, 7
    %v376 = vsub.s32 %v254, %v375
    %v377 = vrot.slane %v343, %v376
    %v378 = vlaneseq
    %v379 = vshrl.u32 %v378, 7
    %v380 = vsub.s32 %v254, %v379
    %v381 = vrot.slane %v346, %v380
    %v382 = vlaneseq
    %v383 = vshrl.u32 %v382, 7
    %v384 = vsub.s32 %v254, %v383
    %v385 = vrot.slane %v349, %v384
    %v386 = vlaneseq
    %v387 = vshrl.u32 %v386, 7
    %v388 = vsub.s32 %v254, %v387
    %v389 = vrot.slane %v352, %v388
    %v390 = vlaneseq
    %v391 = vshrl.u32 %v390, 7
    %v392 = vsub.s32 %v254, %v391
    %v393 = vrot.slane %v355, %v392
    %v394 = vlaneseq
    %v395 = vshrl.u32 %v394, 7
    %v396 = vsub.s32 %v254, %v395
    %v397 = vrot.slane %v358, %v396
    %v398 = vlaneseq
    %v399 = vshrl.u32 %v398, 7
    %v400 = vsub.s32 %v254, %v399
    %v401 = vrot.slane %v361, %v400
    %v402 = vsel %vm287, %v377, %v373
    %v403 = vsel %vm289, %v381, %v402
    %v404 = vsel %vm291, %v385, %v403
    %v405 = vsel %vm293, %v389, %v404
    %v406 = vsel %vm295, %v393, %v405
    %v407 = vsel %vm297, %v397, %v406
    %v408 = vsel %vm299, %v401, %v407
    %v410 = vmul.f32 %v314, %v408
    %v411 = vsel %vm303, %v410, 0.0
    %412 = vadd.xlane.f32.xlu0 %v411
    %v413 = vpop.xlane.xlu0 %412
    %v414 = vstv %s193
    %v415 = vadd.f32 %v413, %v414
    %v417 = vlaneseq
    %v418 = vshrl.u32 %v417, 7
    %v419 = vsub.s32 %v254, %v418
    %v420 = vrot.slane %v415, %v419
    %vm422 = vcmask 57344
    %423 = vst.msk [vmem:[#allocation7] sm:$0x1] %vm422, %v420
    // Predicated region
    $region38: #{tpu_custom_call.1} parent=1 // pred_check
      _
    $region39: #{tpu_custom_call.1} parent=1 // pred_check_branch
      %425 = sbr.rel (0) target = $region41
    $region40: #{tpu_custom_call.1} parent=1 // pred_region
      %s427 = ssub.s32 16, 16
      %428 = vsyncadd [#allocation4], %s427
      %s430 = sshll.u32 [#allocation7], 4
      %s431 = int_to_ptr.vmem [resolvable:$true] %s430
      %433 = dma.vmem_to_hbm [thread:$0]  %s431, 16, %s7, [#allocation4]
    $region41: #{tpu_custom_call.1} parent=1 // pred_fallthru
      _
    // Predicated region
    $region42: #{tpu_custom_call.1} parent=1 // pred_check
      _
    $region43: #{tpu_custom_call.1} parent=1 // pred_check_branch
      %435 = sbr.rel (0) target = $region45
    $region44: #{tpu_custom_call.1} parent=1 // pred_region
      %436 = dma.done [#allocation4], 16
    $region45: #{tpu_custom_call.1} parent=1 // pred_fallthru
      _
    %437 = vsyncpa [#allocation3], 1
    %438 = vsyncpa [#allocation4], 1
    %439 = vsyncpa [#allocation5], 1

</llo_original>
